<compile_context>
chip_gen: v7x
topology: tpu7x:2x2x1
jax: 0.10.0
libtpu: 0.0.40
codegen_flags: <defaults>
</compile_context>

<pallas_src>
import functools

import jax
import jax.numpy as jnp
from jax.experimental import pallas as pl
from jax.experimental.pallas import tpu as pltpu


def _round_up(x, m):
    return ((x + m - 1) // m) * m


def _pick_tm(batch, block_m):
    # Tiny batches: one 16-aligned tile (bf16 sublane packing), no wasted rows.
    if batch <= 128:
        return _round_up(batch, 16)
    # Mid batches: 128-tall tiles -> >=2 grid steps for v7x megacore, v5e-native.
    if batch <= 2 * block_m:
        return 128
    # Large batches: MXU-height (256) tiles on v6e/v7x.
    return block_m


def _pick_tn(d_out_pad):
    # Lane-dense N tile; keep the whole width resident when it is small,
    # otherwise tile so the weight block stays a few hundred KiB.
    if d_out_pad <= 1024:
        return d_out_pad
    for tn in (1024, 512, 256, 128):
        if d_out_pad % tn == 0:
            return tn
    return d_out_pad  # unreachable: d_out_pad is a multiple of 128


def _linear_kernel(x_ref, w_ref, b_ref, o_ref):
    # y_tile = x_tile @ W_t_tile + b_tile, all operands resident in VMEM.
    # bf16 operands, f32 MXU accumulation, f32 bias add.
    acc = jnp.dot(x_ref[...], w_ref[...], preferred_element_type=jnp.float32)
    o_ref[...] = (acc + b_ref[...]).astype(o_ref.dtype)


def prepare_clinical_encoder_params(weight, bias, compute_dtype=jnp.bfloat16):
    """One-time parameter prep (call OUTSIDE the per-step forward).

    weight: (D_out, D_in)  PyTorch nn.Linear layout
    bias:   (D_out,)
    Returns:
      w_t: (D_in, D_out_pad) compute_dtype  (transposed + lane-padded + cast)
      b2d: (1, D_out_pad)    float32        (lane-padded)
    """
    d_out, _ = weight.shape
    d_out_pad = _round_up(d_out, 128)
    if d_out_pad != d_out:
        weight = jnp.pad(weight, ((0, d_out_pad - d_out), (0, 0)))
        bias = jnp.pad(bias, ((0, d_out_pad - d_out),))
    w_t = jnp.asarray(weight.T, dtype=compute_dtype)          # (D_in, D_out_pad)
    b2d = jnp.asarray(bias, dtype=jnp.float32).reshape(1, d_out_pad)
    return w_t, b2d


@functools.partial(
    jax.jit, static_argnames=("out_dim", "block_m", "compute_dtype")
)
def clinical_encoder_forward(x, w_t, b2d, *, out_dim, block_m=256,
                             compute_dtype=jnp.bfloat16):
    """Equivalent of torch.nn.Linear(input_dim, output_dim)(x).

    x:    (B, D_in) float32
    w_t:  (D_in, D_out_pad) from prepare_clinical_encoder_params
    b2d:  (1, D_out_pad)    from prepare_clinical_encoder_params
    Returns (B, out_dim) in x.dtype.
    """
    B, D_in = x.shape
    _, D_out_pad = w_t.shape
    out_dtype = x.dtype

    tm = _pick_tm(B, block_m)
    tn = _pick_tn(D_out_pad)
    B_pad = _round_up(B, tm)

    if B_pad != B:
        x = jnp.pad(x, ((0, B_pad - B), (0, 0)))
    # bf16 feed to the MXU (accumulation stays f32 inside the kernel).
    x = x.astype(compute_dtype)

    n_tiles = D_out_pad // tn
    b_tiles = B_pad // tm
    # N axis is the SLOW grid axis so each weight tile stays VMEM-resident
    # across the whole inner batch loop.
    grid = (n_tiles, b_tiles)

    itemsize_c = jnp.dtype(compute_dtype).itemsize
    itemsize_o = jnp.dtype(out_dtype).itemsize
    w_blk = D_in * tn * itemsize_c          # 1 buffer (Buffered(1))
    x_blk = tm * D_in * itemsize_c          # 2 buffers (default pipeline)
    o_blk = tm * tn * itemsize_o            # 2 buffers
    b_blk = tn * 4                          # 1 buffer
    needed = w_blk + 2 * x_blk + 2 * o_blk + b_blk
    vmem_limit = int(min(max(2 * needed, 4 << 20), 48 << 20))

    cost = pl.CostEstimate(
        flops=2 * B_pad * D_in * D_out_pad,
        transcendentals=0,
        bytes_accessed=(x.size * itemsize_c + w_t.size * itemsize_c
                        + b2d.size * 4 + B_pad * D_out_pad * itemsize_o),
    )

    out = pl.pallas_call(
        _linear_kernel,
        out_shape=jax.ShapeDtypeStruct((B_pad, D_out_pad), out_dtype),
        grid=grid,
        in_specs=[
            # x: tiled along batch, re-read once per N tile, double-buffered.
            pl.BlockSpec((tm, D_in), lambda j, i: (i, 0)),
            # weight (transposed): depends only on the slow N axis -> resident
            # across the batch loop; single-buffered to halve its VMEM cost.
            pl.BlockSpec((D_in, tn), lambda j, i: (0, j),
                         pipeline_mode=pl.Buffered(1)),
            # bias: same residency story as the weight.
            pl.BlockSpec((1, tn), lambda j, i: (0, j),
                         pipeline_mode=pl.Buffered(1)),
        ],
        out_specs=pl.BlockSpec((tm, tn), lambda j, i: (i, j)),
        compiler_params=pltpu.CompilerParams(
            # Both axes are independent: shard across TensorCores on v7x.
            dimension_semantics=("parallel", "parallel"),
            vmem_limit_bytes=vmem_limit,
        ),
        cost_estimate=cost,
    )(x, w_t, b2d)

    # Slice away batch / lane padding.
    return out[:B, :out_dim]


if __name__ == "__main__":
    key = jax.random.PRNGKey(0)
    k_x, k_w, k_b = jax.random.split(key, 3)

    batch = 8
    input_dim = 32
    output_dim = 128

    # Deterministic synthetic parameters (PyTorch nn.Linear shapes).
    x = jax.random.normal(k_x, (batch, input_dim), dtype=jnp.float32)
    weight = jax.random.normal(k_w, (output_dim, input_dim), dtype=jnp.float32) * 0.05
    bias = jax.random.normal(k_b, (output_dim,), dtype=jnp.float32) * 0.01

    # One-time param prep (pad + transpose + bf16 cast), hoisted out of forward.
    w_t, b2d = prepare_clinical_encoder_params(weight, bias)

    out = clinical_encoder_forward(x, w_t, b2d, out_dim=output_dim)
    jax.block_until_ready(out)

    # Reference check against plain JAX (same math as torch.nn.Linear).
    # Tolerance relaxed because the MXU operands are bf16 (f32 accumulation).
    ref = x @ weight.T + bias
    assert out.shape == (batch, output_dim)
    assert jnp.allclose(out, ref, atol=2e-2, rtol=2e-2), float(
        jnp.max(jnp.abs(out - ref))
    )

    print("KERNEL_OK")
</pallas_src>

<mosaic_0001>
module attributes {stable_mosaic.version = 11 : i64} {
  func.func @_linear_kernel(%arg0: i32, %arg1: i32, %arg2: memref<16x32xbf16, #tpu.memory_space<vmem>>, %arg3: memref<32x128xbf16, #tpu.memory_space<vmem>>, %arg4: memref<1x128xf32, #tpu.memory_space<vmem>>, %arg5: memref<16x128xf32, #tpu.memory_space<vmem>>) attributes {dimension_semantics = [#tpu.dimension_semantics<parallel>, #tpu.dimension_semantics<parallel>], iteration_bounds = array<i64: 1, 1>, scalar_prefetch = 0 : i64, scratch_operands = 0 : i64, tpu.core_type = #tpu.core_type<tc>, window_params = [{transform_indices = @transform_0, window_bounds = array<i64: 16, 32>}, {pipeline_mode = #tpu.pipeline_mode<synchronous>, transform_indices = @transform_1, window_bounds = array<i64: 32, 128>}, {pipeline_mode = #tpu.pipeline_mode<synchronous>, transform_indices = @transform_2, window_bounds = array<i64: 1, 128>}, {transform_indices = @transform_3, window_bounds = array<i64: 16, 128>}]} {
    %c0 = arith.constant 0 : index
    %c0_0 = arith.constant 0 : index
    %0 = vector.load %arg2[%c0, %c0_0] : memref<16x32xbf16, #tpu.memory_space<vmem>>, vector<16x32xbf16>
    %c0_1 = arith.constant 0 : index
    %c0_2 = arith.constant 0 : index
    %1 = vector.load %arg3[%c0_1, %c0_2] : memref<32x128xbf16, #tpu.memory_space<vmem>>, vector<32x128xbf16>
    %cst = arith.constant dense<0.000000e+00> : vector<16x128xf32>
    %2 = tpu.matmul %0, %1, %cst {dimension_numbers = #tpu.dot_dimension_numbers<[1], [0], [0], [1], [0, 0, 1, 1], [], []>} : vector<16x32xbf16>, vector<32x128xbf16>, vector<16x128xf32> -> vector<16x128xf32>
    %c0_3 = arith.constant 0 : index
    %c0_4 = arith.constant 0 : index
    %3 = vector.load %arg4[%c0_3, %c0_4] : memref<1x128xf32, #tpu.memory_space<vmem>>, vector<1x128xf32>
    %4 = vector.broadcast %3 : vector<1x128xf32> to vector<16x128xf32>
    %5 = arith.addf %2, %4 : vector<16x128xf32>
    %c0_5 = arith.constant 0 : index
    %c0_6 = arith.constant 0 : index
    %6 = vector.load %arg5[%c0_5, %c0_6] : memref<16x128xf32, #tpu.memory_space<vmem>>, vector<16x128xf32>
    tpu.vector_store %arg5[%c0_5, %c0_6], %5 {strides = array<i32>} : memref<16x128xf32, #tpu.memory_space<vmem>>, vector<16x128xf32>,
    return
  }
  func.func @transform_0(%arg0: i32, %arg1: i32) -> (i32, i32) {
    %c0_i32 = arith.constant 0 : i32
    %c0_i32_0 = arith.constant 0 : i32
    return %arg1, %c0_i32 : i32, i32
  }
  func.func @transform_1(%arg0: i32, %arg1: i32) -> (i32, i32) {
    %c0_i32 = arith.constant 0 : i32
    %c0_i32_0 = arith.constant 0 : i32
    return %c0_i32, %arg0 : i32, i32
  }
  func.func @transform_2(%arg0: i32, %arg1: i32) -> (i32, i32) {
    %c0_i32 = arith.constant 0 : i32
    %c0_i32_0 = arith.constant 0 : i32
    return %c0_i32, %arg0 : i32, i32
  }
  func.func @transform_3(%arg0: i32, %arg1: i32) -> (i32, i32) {
    %c0_i32 = arith.constant 0 : i32
    return %arg1, %arg0 : i32, i32
  }
}

</mosaic_0001>

<llo_original>
// kernel: clinical_encoder_forward.1
$region0: #{clinical_encoder_forward.1}
  #allocation0 [shape = 'u32[]', space=smem, size = 0x4, offset = 0x4, fixed_abs, tag = 'smem constant byte address 0x4 - core index']
  #allocation1 [shape = 'u32[144,128]{1,0:T(1,128)}', space=vmem, size = 0x12000, scoped, tag = 'internal scratch']
  %s0 = inlined_call_operand.vmem [shape: bf16[16,32], index: 0, kind: input, shape index: {}]
  %s1 = inlined_call_operand.vmem [shape: bf16[32,128], index: 1, kind: input, shape index: {}]
  %s2 = inlined_call_operand.vmem [shape: f32[1,128], index: 2, kind: input, shape index: {}]
  %s3 = inlined_call_operand.vmem [shape: f32[16,128], index: 3, kind: output, shape index: {}]
  %s4 = sld [smem:[#allocation0]]
  $region22: #{clinical_encoder_forward.1} parent=0
    _
  %s6 = ssub.s32 1, %s4
  %s7 = scalar_select 0, %s6, %s4
  // Predicated region
  $region2: #{clinical_encoder_forward.1} parent=0 // pred_check
    _
  $region3: #{clinical_encoder_forward.1} parent=0 // pred_check_branch
    %9 = sbr.rel (0) target = $region5
  $region4: #{clinical_encoder_forward.1} parent=0 // pred_region
    _
  $region5: #{clinical_encoder_forward.1} parent=0 // pred_fallthru
    _
  // Predicated region
  $region6: #{clinical_encoder_forward.1} parent=0 // pred_check
    _
  $region7: #{clinical_encoder_forward.1} parent=0 // pred_check_branch
    %11 = sbr.rel (0) target = $region9
  $region8: #{clinical_encoder_forward.1} parent=0 // pred_region
    _
  $region9: #{clinical_encoder_forward.1} parent=0 // pred_fallthru
    _
  // Predicated region
  $region10: #{clinical_encoder_forward.1} parent=0 // pred_check
    _
  $region11: #{clinical_encoder_forward.1} parent=0 // pred_check_branch
    %13 = sbr.rel (0) target = $region13
  $region12: #{clinical_encoder_forward.1} parent=0 // pred_region
    _
  $region13: #{clinical_encoder_forward.1} parent=0 // pred_fallthru
    _
  %v15 = vld [vmem:[%s0] sm:$0xf]
  %v16 = vld [vmem:[%s0 + $0x4] sm:$0xf]
  %v17 = vld [vmem:[%s1] sm:$0xf]
  %v18 = vld [vmem:[%s1 + $0x4] sm:$0xf]
  %v19 = vld [vmem:[%s1 + $0x8] sm:$0xf]
  %v20 = vld [vmem:[%s1 + $0xc] sm:$0xf]
  %v21 = vld [vmem:[%s2] sm:$0x1]
  %v23 = vlaneseq
  %v24 = vshrl.u32 %v23, 7
  %v25 = vsub.s32 0, %v24
  %v26 = vrot.slane %v21, %v25
  %v30 = vunpack.c.l.b16 %v15
  %v31 = vunpack.c.l.b16 %v16
  %v32 = vpack.c.b16 %v31, %v30
  %v37 = vunpack.c.l.b16 %v17
  %v38 = vunpack.c.l.b16 %v18
  %v39 = vunpack.c.l.b16 %v19
  %v40 = vunpack.c.l.b16 %v20
  %v41 = vpack.c.b16 %v38, %v37
  %v42 = vpack.c.b16 %v40, %v39
  %vm45 = vcmask 261120
  %v47 = vsel %vm45, %v32, 0
  %49 = vmatprep.subr.bf16.mxu0 0
  %50 = vmatpush1.bf16.msra.mxu0 %v41
  %51 = vmatprep.subr.bf16.mxu0 0
  %52 = vmatpush1.bf16.msra.mxu0 %v42
  %53 = vmatprep.subr.bf16.mxu0 0
  %54 = vmatpush1.bf16.msra.mxu0 0
  %55 = vmatprep.subr.bf16.mxu0 0
  %56 = vmatpush1.bf16.msra.mxu0 0
  %57 = vmatprep.subr.bf16.mxu0 0
  %58 = vmatpush1.bf16.msra.mxu0 0
  %59 = vmatprep.subr.bf16.mxu0 0
  %60 = vmatpush1.bf16.msra.mxu0 0
  %61 = vmatprep.subr.bf16.mxu0 0
  %62 = vmatpush1.bf16.msra.mxu0 0
  %63 = vmatprep.subr.bf16.mxu0 0
  %64 = vmatpush1.bf16.msra.mxu0 0
  %65 = vmatprep.subr.bf16.mxu0 0
  %66 = vmatpush1.bf16.msra.mxu0 0
  %67 = vmatprep.subr.bf16.mxu0 0
  %68 = vmatpush1.bf16.msra.mxu0 0
  %69 = vmatprep.subr.bf16.mxu0 0
  %70 = vmatpush1.bf16.msra.mxu0 0
  %71 = vmatprep.subr.bf16.mxu0 0
  %72 = vmatpush1.bf16.msra.mxu0 0
  %73 = vmatprep.subr.bf16.mxu0 0
  %74 = vmatpush1.bf16.msra.mxu0 0
  %75 = vmatprep.subr.bf16.mxu0 0
  %76 = vmatpush1.bf16.msra.mxu0 0
  %77 = vmatprep.subr.bf16.mxu0 0
  %78 = vmatpush1.bf16.msra.mxu0 0
  %79 = vmatprep.subr.bf16.mxu0 0
  %80 = vmatpush1.bf16.msra.mxu0 0
  %81 = vmatprep.mubr.bf16.mxu0 0
  %82 = vmatmul.mubr.bf16.gmra.mrb[0].mxu0 %v47
  %v83 = vpop.f32.mrb[0].mxu0
  %v84 = vadd.f32 %v26, %v83
  %v85 = vpop.f32.mrb[0].mxu0
  %v86 = vpop.f32.mrb[0].mxu0
  %v87 = vadd.f32 %v26, %v86
  %v88 = vpop.f32.mrb[0].mxu0
  %89 = vdwg.mxu0
  %90 = vst [vmem:[%s3] sm:$0xff] %v84
  %91 = vst [vmem:[%s3 + $0x8] sm:$0xff] %v87
  // Predicated region
  $region14: #{clinical_encoder_forward.1} parent=0 // pred_check
    _
  $region15: #{clinical_encoder_forward.1} parent=0 // pred_check_branch
    %93 = sbr.rel (0) target = $region17
  $region16: #{clinical_encoder_forward.1} parent=0 // pred_region
    _
  $region17: #{clinical_encoder_forward.1} parent=0 // pred_fallthru
    _
  // Predicated region
  $region18: #{clinical_encoder_forward.1} parent=0 // pred_check
    _
  $region19: #{clinical_encoder_forward.1} parent=0 // pred_check_branch
    %95 = sbr.rel (0) target = $region21
  $region20: #{clinical_encoder_forward.1} parent=0 // pred_region
    _
  $region21: #{clinical_encoder_forward.1} parent=0 // pred_fallthru
    _

</llo_original>
